<compile_context>
chip_gen: v5e
topology: v5e:2x2
jax: 0.10.0
libtpu: 0.0.40
codegen_flags: <defaults>
</compile_context>

<pallas_src>
import jax
import jax.numpy as jnp
from jax import lax
from jax.experimental import pallas as pl
from jax.experimental.pallas import tpu as pltpu

_PAIRWISE_EPS = 1e-6  # torch.nn.functional.pairwise_distance default eps
_LANES = 128
_SUBLANES = 8


def _vmem_capacity_bytes():
    """Physical VMEM per TensorCore (falls back to the smallest, v7x)."""
    try:
        return int(pltpu.get_tpu_info().vmem_capacity_bytes)
    except Exception:
        return 64 << 20


def _vmem_policy():
    """Returns (tile VMEM budget, vmem_limit_bytes), generation-gated."""
    cap = _vmem_capacity_bytes()
    if cap >= (100 << 20):            # v5e / v6e: 128 MiB physical VMEM
        return 56 << 20, 96 << 20
    return 24 << 20, 48 << 20         # v7x: 64 MiB per TensorCore


def _choose_batch_tile(B, D, itemsize, *, vmem_budget_bytes,
                       target_block_bytes, max_batch_tile=None):
    """Batch tile sized by bytes (not rows), padding-aware, megacore-friendly."""
    d_pad = ((max(D, 1) + _LANES - 1) // _LANES) * _LANES
    # x1 + x2 blocks double-buffered, plus the (TB, 1) label block (padded to
    # 128 f32 lanes), also double-buffered.
    per_row_bytes = 2 * 2 * d_pad * itemsize + 2 * _LANES * 4
    tb_target = max(target_block_bytes // max(d_pad * itemsize, 1), _SUBLANES)
    tb_vmem = max(vmem_budget_bytes // max(per_row_bytes, 1), _SUBLANES)
    tb = min(tb_target, tb_vmem)
    if max_batch_tile is not None:
        tb = min(tb, max_batch_tile)
    # Keep >= ~4 grid steps for non-trivial batches so the "parallel" axis can
    # be sharded across v7x's two TensorCores.
    if B >= 8 * _SUBLANES:
        tb = min(tb, max(_SUBLANES, (B // 4) // _SUBLANES * _SUBLANES))
    tb = max(_SUBLANES, (tb // _SUBLANES) * _SUBLANES)
    if tb >= B:
        return B  # single full-batch block (legal: equals the full array dim)
    return tb
    # TODO(synk): add a feature-dim ("arbitrary") grid axis with an f32
    # sum-of-squares accumulator for D so large that even an 8-row block
    # exceeds the VMEM budget (robustness on v7x's 64 MiB).


def make_contrastive_loss(pos_margin: float = 0.1, neg_margin: float = 5.0, *,
                          target_block_bytes: int = 4 << 20,
                          max_batch_tile=None):
    """Returns forward(x1, x2, label) -> scalar f32 loss (Pallas TPU).

    x1/x2 may be bf16 (recommended: halves HBM traffic for this purely
    bandwidth-bound op); the kernel upcasts to f32 internally so accumulation
    and sqrt stay full precision on every TPU generation.
    """
    pos_margin = float(pos_margin)
    neg_margin = float(neg_margin)

    @jax.jit
    def forward(x1, x2, label):
        B, D = x1.shape
        assert x2.shape == (B, D), (x2.shape, (B, D))
        if label.ndim == 1:
            label = label[:, None]
        assert label.shape == (B, 1), label.shape
        label = label.astype(jnp.float32)

        vmem_budget_bytes, vmem_limit_bytes = _vmem_policy()
        itemsize = jnp.dtype(x1.dtype).itemsize
        tb = _choose_batch_tile(
            B, D, itemsize,
            vmem_budget_bytes=vmem_budget_bytes,
            target_block_bytes=target_block_bytes,
            max_batch_tile=max_batch_tile)
        num_tiles = pl.cdiv(B, tb)
        needs_mask = (B % tb) != 0

        def kernel(x1_ref, x2_ref, label_ref, out_ref):
            # Upcast so bf16 inputs still accumulate / sqrt in f32.
            a = x1_ref[...].astype(jnp.float32)                    # (tb, D)
            b = x2_ref[...].astype(jnp.float32)
            diff = (a - b) + _PAIRWISE_EPS                         # VPU
            sq = jnp.sum(diff * diff, axis=-1, keepdims=True)      # (tb, 1)
            d = jnp.sqrt(sq)
            lbl = label_ref[...].astype(jnp.float32)               # (tb, 1)
            loss = (lbl * jnp.maximum(d - pos_margin, 0.0)
                    + (1.0 - lbl) * jnp.maximum(neg_margin - d, 0.0))
            if needs_mask:
                # Zero padded rows of the ragged last tile so the fused
                # partial sum never includes OOB/garbage rows.
                row = (pl.program_id(0) * tb
                       + lax.broadcasted_iota(jnp.int32, (tb, 1), 0))
                loss = jnp.where(row < B, loss, 0.0)
            partial = jnp.sum(loss)                                # scalar
            # Lane-dense (1, 128) broadcast store; avoids masked vst.msk and
            # the sublane-strided layout of a (tb, 1) output block.
            out_ref[...] = jnp.full(out_ref.shape, partial, jnp.float32)

        partials = pl.pallas_call(
            kernel,
            out_shape=jax.ShapeDtypeStruct((num_tiles, _LANES), jnp.float32),
            grid=(num_tiles,),
            in_specs=[
                pl.BlockSpec((tb, D), lambda i: (i, 0)),
                pl.BlockSpec((tb, D), lambda i: (i, 0)),
                pl.BlockSpec((tb, 1), lambda i: (i, 0)),
            ],
            out_specs=pl.BlockSpec((1, _LANES), lambda i: (i, 0)),
            compiler_params=pltpu.CompilerParams(
                dimension_semantics=("parallel",),   # shard across v7x's 2 TCs
                vmem_limit_bytes=vmem_limit_bytes,
            ),
        )(x1, x2, label)

        # Tiny reduction over num_tiles scalars; divide by the TRUE batch size.
        return jnp.sum(partials[:, 0]) / jnp.float32(B)

    return forward


def contrastive_loss_ref(x1, x2, label, pos_margin=0.1, neg_margin=5.0):
    """Pure-JAX reference mirroring the PyTorch forward."""
    diff = x1.astype(jnp.float32) - x2.astype(jnp.float32) + _PAIRWISE_EPS
    d = jnp.sqrt(jnp.sum(diff * diff, axis=-1, keepdims=True))
    loss = label * jnp.maximum(d - pos_margin, 0.0) + (1.0 - label) * jnp.maximum(
        neg_margin - d, 0.0
    )
    return jnp.mean(loss)


if __name__ == "__main__":
    key = jax.random.PRNGKey(0)
    k1, k2, k3, k4, k5, k6, k7, k8, k9 = jax.random.split(key, 9)

    # Config 1: small embedding batch (single full-batch block).
    B, D = 8, 32
    x1 = jax.random.normal(k1, (B, D), dtype=jnp.float32)
    x2 = jax.random.normal(k2, (B, D), dtype=jnp.float32)
    label = jax.random.bernoulli(k3, 0.5, (B, 1)).astype(jnp.float32)

    forward = make_contrastive_loss(pos_margin=0.1, neg_margin=5.0)
    loss = forward(x1, x2, label)
    jax.block_until_ready(loss)
    ref = contrastive_loss_ref(x1, x2, label)
    assert jnp.allclose(loss, ref, rtol=1e-5, atol=1e-5), (loss, ref)

    # Config 2: ragged batch + forced small tile -> exercises the multi-tile
    # pipelined grid, the in-kernel masking of the partial last tile, and the
    # fused per-tile partial sums.
    B2, D2 = 20, 128
    y1 = jax.random.normal(k4, (B2, D2), dtype=jnp.float32)
    y2 = jax.random.normal(k5, (B2, D2), dtype=jnp.float32)
    lbl2 = jax.random.bernoulli(k6, 0.5, (B2, 1)).astype(jnp.float32)

    forward_tiled = make_contrastive_loss(0.1, 5.0, max_batch_tile=8)
    loss2 = forward_tiled(y1, y2, lbl2)
    jax.block_until_ready(loss2)
    ref2 = contrastive_loss_ref(y1, y2, lbl2)
    assert jnp.allclose(loss2, ref2, rtol=1e-5, atol=1e-5), (loss2, ref2)

    # Config 3: bf16 inputs (half the HBM bytes); kernel upcasts to f32.
    B3, D3 = 16, 64
    z1 = jax.random.normal(k7, (B3, D3), dtype=jnp.bfloat16)
    z2 = jax.random.normal(k8, (B3, D3), dtype=jnp.bfloat16)
    lbl3 = jax.random.bernoulli(k9, 0.5, (B3, 1)).astype(jnp.float32)
    loss3 = forward(z1, z2, lbl3)
    jax.block_until_ready(loss3)
    ref3 = contrastive_loss_ref(z1, z2, lbl3)
    assert jnp.allclose(loss3, ref3, rtol=1e-3, atol=1e-3), (loss3, ref3)

    print("KERNEL_OK")
</pallas_src>

<mosaic_0001>
module attributes {stable_mosaic.version = 11 : i64} {
  func.func @kernel(%arg0: i32, %arg1: memref<8x32xf32, #tpu.memory_space<vmem>>, %arg2: memref<8x32xf32, #tpu.memory_space<vmem>>, %arg3: memref<8x1xf32, #tpu.memory_space<vmem>>, %arg4: memref<1x128xf32, #tpu.memory_space<vmem>>) attributes {dimension_semantics = [#tpu.dimension_semantics<parallel>], iteration_bounds = array<i64: 1>, scalar_prefetch = 0 : i64, scratch_operands = 0 : i64, tpu.core_type = #tpu.core_type<tc>, window_params = [{transform_indices = @transform_0, window_bounds = array<i64: 8, 32>}, {transform_indices = @transform_1, window_bounds = array<i64: 8, 32>}, {transform_indices = @transform_2, window_bounds = array<i64: 8, 1>}, {transform_indices = @transform_3, window_bounds = array<i64: 1, 128>}]} {
    %c0 = arith.constant 0 : index
    %c0_0 = arith.constant 0 : index
    %0 = vector.load %arg1[%c0, %c0_0] : memref<8x32xf32, #tpu.memory_space<vmem>>, vector<8x32xf32>
    %c0_1 = arith.constant 0 : index
    %c0_2 = arith.constant 0 : index
    %1 = vector.load %arg2[%c0_1, %c0_2] : memref<8x32xf32, #tpu.memory_space<vmem>>, vector<8x32xf32>
    %2 = arith.subf %0, %1 : vector<8x32xf32>
    %cst = arith.constant 9.99999997E-7 : f32
    %3 = vector.broadcast %cst : f32 to vector<8x32xf32>
    %4 = arith.addf %2, %3 : vector<8x32xf32>
    %5 = arith.mulf %4, %4 : vector<8x32xf32>
    %cst_3 = arith.constant dense<0.000000e+00> : vector<8xf32>
    %6 = vector.multi_reduction <add>, %5, %cst_3 [1] : vector<8x32xf32> to vector<8xf32>
    %7 = vector.shape_cast %6 : vector<8xf32> to vector<8x1xf32>
    %8 = math.sqrt %7 : vector<8x1xf32>
    %c0_4 = arith.constant 0 : index
    %c0_5 = arith.constant 0 : index
    %9 = vector.load %arg3[%c0_4, %c0_5] : memref<8x1xf32, #tpu.memory_space<vmem>>, vector<8x1xf32>
    %cst_6 = arith.constant 1.000000e-01 : f32
    %10 = vector.broadcast %cst_6 : f32 to vector<8x1xf32>
    %11 = arith.subf %8, %10 : vector<8x1xf32>
    %cst_7 = arith.constant 0.000000e+00 : f32
    %12 = vector.broadcast %cst_7 : f32 to vector<8x1xf32>
    %13 = arith.maximumf %11, %12 : vector<8x1xf32>
    %14 = arith.mulf %9, %13 : vector<8x1xf32>
    %cst_8 = arith.constant 1.000000e+00 : f32
    %15 = vector.broadcast %cst_8 : f32 to vector<8x1xf32>
    %16 = arith.subf %15, %9 : vector<8x1xf32>
    %cst_9 = arith.constant 5.000000e+00 : f32
    %17 = vector.broadcast %cst_9 : f32 to vector<8x1xf32>
    %18 = arith.subf %17, %8 : vector<8x1xf32>
    %cst_10 = arith.constant 0.000000e+00 : f32
    %19 = vector.broadcast %cst_10 : f32 to vector<8x1xf32>
    %20 = arith.maximumf %18, %19 : vector<8x1xf32>
    %21 = arith.mulf %16, %20 : vector<8x1xf32>
    %22 = arith.addf %14, %21 : vector<8x1xf32>
    %23 = vector.shape_cast %22 : vector<8x1xf32> to vector<1x8x1xf32>
    %cst_11 = arith.constant dense<0.000000e+00> : vector<1xf32>
    %24 = vector.multi_reduction <add>, %23, %cst_11 [1, 2] : vector<1x8x1xf32> to vector<1xf32>
    %25 = vector.shape_cast %24 : vector<1xf32> to vector<1x1x1xf32>
    %26 = vector.extract %25[0, 0, 0] : f32 from vector<1x1x1xf32>
    %27 = vector.broadcast %26 : f32 to vector<1x128xf32>
    %c0_12 = arith.constant 0 : index
    %c0_13 = arith.constant 0 : index
    %28 = vector.load %arg4[%c0_12, %c0_13] : memref<1x128xf32, #tpu.memory_space<vmem>>, vector<1x128xf32>
    tpu.vector_store %arg4[%c0_12, %c0_13], %27 {strides = array<i32>} : memref<1x128xf32, #tpu.memory_space<vmem>>, vector<1x128xf32>,
    return
  }
  func.func @transform_0(%arg0: i32) -> (i32, i32) {
    %c0_i32 = arith.constant 0 : i32
    %c0_i32_0 = arith.constant 0 : i32
    return %arg0, %c0_i32 : i32, i32
  }
  func.func @transform_1(%arg0: i32) -> (i32, i32) {
    %c0_i32 = arith.constant 0 : i32
    %c0_i32_0 = arith.constant 0 : i32
    return %arg0, %c0_i32 : i32, i32
  }
  func.func @transform_2(%arg0: i32) -> (i32, i32) {
    %c0_i32 = arith.constant 0 : i32
    %c0_i32_0 = arith.constant 0 : i32
    return %arg0, %c0_i32 : i32, i32
  }
  func.func @transform_3(%arg0: i32) -> (i32, i32) {
    %c0_i32 = arith.constant 0 : i32
    %c0_i32_0 = arith.constant 0 : i32
    return %arg0, %c0_i32 : i32, i32
  }
}

</mosaic_0001>

<llo_original>
// kernel: forward.1
$region0: #{forward.1}
  #allocation0 [shape = 'u32[]', space=smem, size = 0x4, offset = 0x4, fixed_abs, tag = 'smem constant byte address 0x4 - core index']
  #allocation1 [shape = 'u32[72,128]{1,0:T(1,128)}', space=vmem, size = 0x9000, scoped, tag = 'internal scratch']
  %s0 = inlined_call_operand.vmem [shape: f32[8,32], index: 0, kind: input, shape index: {}]
  %s1 = inlined_call_operand.hbm [shape: f32[8,32], index: 1, kind: input, shape index: {}]
  %s2 = inlined_call_operand.vmem [shape: f32[8,1], index: 2, kind: input, shape index: {}]
  %s3 = inlined_call_operand.vmem [shape: f32[1,128], index: 3, kind: output, shape index: {}]
  %s4 = sld [smem:[#allocation0]]
  $region26: #{forward.1} parent=0
    _
  %s6 = ssub.s32 1, %s4
  %s7 = scalar_select 0, %s6, %s4
  $region1: #{forward.1} parent=0
    #allocation2 [shape = 'u8[4096]{0}', space=vmem, size = 0x1000, scoped, tag = 'input window, operand 1, single buffered']
    #allocation3 [shape = 's32[1]{0}', space=sflag, size = 0x4, scoped, tag = 'scoped memory for forward.1']
    %8 = vsyncpa [#allocation3], 0
    // Predicated region
    $region2: #{forward.1} parent=1 // pred_check
      _
    $region3: #{forward.1} parent=1 // pred_check_branch
      %10 = sbr.rel (0) target = $region5
    $region4: #{forward.1} parent=1 // pred_region
      _
    $region5: #{forward.1} parent=1 // pred_fallthru
      _
    // Predicated region
    $region6: #{forward.1} parent=1 // pred_check
      _
    $region7: #{forward.1} parent=1 // pred_check_branch
      %12 = sbr.rel (0) target = $region9
    $region8: #{forward.1} parent=1 // pred_region
      %14 = vsyncadd [#allocation3], 0
      %s16 = sshll.u32 %s1, 4
      %s17 = int_to_ptr.hbm [resolvable:$true] %s16
      %s18 = sshll.u32 [#allocation2], 4
      %s19 = int_to_ptr.vmem [resolvable:$true] %s18
      %21 = dma.hbm_to_vmem [thread:$0]  %s17, 128, %s19, [#allocation3]
    $region9: #{forward.1} parent=1 // pred_fallthru
      _
    // Predicated region
    $region10: #{forward.1} parent=1 // pred_check
      _
    $region11: #{forward.1} parent=1 // pred_check_branch
      %23 = sbr.rel (0) target = $region13
    $region12: #{forward.1} parent=1 // pred_region
      _
    $region13: #{forward.1} parent=1 // pred_fallthru
      _
    // Predicated region
    $region14: #{forward.1} parent=1 // pred_check
      _
    $region15: #{forward.1} parent=1 // pred_check_branch
      %25 = sbr.rel (0) target = $region17
    $region16: #{forward.1} parent=1 // pred_region
      %27 = dma.done [#allocation3], 128
    $region17: #{forward.1} parent=1 // pred_fallthru
      _
    %v28 = vld [vmem:[%s0] sm:$0xff]
    %v29 = vld [vmem:[#allocation2] sm:$0xff]
    %v30 = vsub.f32 %v28, %v29
    %v31 = vadd.f32 %v30, 1e-06
    %v32 = vmul.f32 %v31, %v31
    %vm33 = vcmask 261120
    %v34 = vsel %vm33, %v32, 0.0
    %35 = vadd.xlane.f32.xlu0 %v34
    %v36 = vpop.xlane.xlu0 %35
    %v37 = vrsqrt.pop %v36
    %v38 = vmul.f32 %v37, %v36
    %v39 = vmul.f32 %v38, %v37
    %v40 = vmul.f32 0.5, %v39
    %v41 = vsub.f32 1.5, %v40
    %v42 = vmul.f32 %v37, %v41
    %v43 = vmul.f32 %v36, %v42
    %vm44 = vcmp.eq.f32.partialorder %v36, inf
    %v45 = vsel %vm44, %v36, %v43
    %vm46 = vcmp.eq.f32.partialorder %v36, 0.0
    %v47 = vand.u32 %v36, 2147483648
    %v48 = vsel %vm46, %v47, %v45
    %v49 = vld [vmem:[%s2] sm:$0xff]
    %v50 = vsub.f32 %v48, 0.1
    %v51 = vmax.f32 %v50, 0.0
    %v52 = vmul.f32 %v49, %v51
    %v53 = vsub.f32 1.0, %v49
    %v54 = vsub.f32 5.0, %v48
    %v55 = vmax.f32 %v54, 0.0
    %v56 = vmul.f32 %v53, %v55
    %v57 = vadd.f32 %v52, %v56
    %vm58 = vcmask 7168
    %v59 = vsel %vm58, %v57, 0.0
    %60 = vadd.xlane.f32.xlu0 %v59
    %v61 = vpop.xlane.xlu0 %60
    %v62 = vrot.slane %v61, 4
    %v63 = vadd.f32 %v61, %v62
    %v64 = vrot.slane %v63, 2
    %v65 = vadd.f32 %v63, %v64
    %v66 = vrot.slane %v65, 1
    %v67 = vadd.f32 %v65, %v66
    %s68 = vtos %v67
    %v69 = vstv %s68
    %70 = vst [vmem:[%s3] sm:$0x1] %v69
    // Predicated region
    $region18: #{forward.1} parent=1 // pred_check
      _
    $region19: #{forward.1} parent=1 // pred_check_branch
      %72 = sbr.rel (0) target = $region21
    $region20: #{forward.1} parent=1 // pred_region
      _
    $region21: #{forward.1} parent=1 // pred_fallthru
      _
    // Predicated region
    $region22: #{forward.1} parent=1 // pred_check
      _
    $region23: #{forward.1} parent=1 // pred_check_branch
      %74 = sbr.rel (0) target = $region25
    $region24: #{forward.1} parent=1 // pred_region
      _
    $region25: #{forward.1} parent=1 // pred_fallthru
      _
    %75 = vsyncpa [#allocation3], 1

</llo_original>
